<compile_context>
chip_gen: v6e
topology: v6e:2x2x1
jax: 0.10.0
libtpu: 0.0.40
codegen_flags: <defaults>
</compile_context>

<pallas_src>
import jax
import jax.numpy as jnp
from jax.experimental import pallas as pl
from jax.experimental.pallas import tpu as pltpu

BN_EPS = 1e-5


def _round_up(n, m):
    return ((n + m - 1) // m) * m


def _vmem_budget_bytes():
    # ~60% of physical VMEM (v5e/v6e: 128 MiB -> ~76 MiB, v7x: 64 MiB -> ~38 MiB),
    # with a conservative fallback if the query is unavailable.
    try:
        info = pltpu.get_tpu_info()
        cap = int(getattr(info, "vmem_capacity_bytes", 64 << 20))
    except Exception:
        cap = 64 << 20
    return int(min(cap * 0.6, 96 << 20))


def _pick_tile_b(bytes_per_row, budget, B):
    """Largest sublane-aligned batch tile that fits the double-buffered budget."""
    if B < 8:
        return B                              # block dim == full dim (legal)
    tb = (budget // max(int(bytes_per_row), 1)) // 8 * 8
    return int(max(8, min(1024, (B // 8) * 8, tb)))


# ---------------------------------------------------------------------------
# Kernel 1: z = x @ w1 on the MXU (x stays in its native dtype, f32 accumulate)
# ---------------------------------------------------------------------------
def _linear1_kernel(x_ref, w1_ref, z_ref):
    z_ref[...] = jnp.dot(x_ref[...], w1_ref[...],
                         preferred_element_type=jnp.float32)


# ---------------------------------------------------------------------------
# Kernel 2: out = (z * scale + shift) * w2 + b2   (BN folded into scale/shift)
# ---------------------------------------------------------------------------
def _bn_linear2_kernel(ss_ref, z_ref, w2_ref, b2_ref, out_ref):
    scale = ss_ref[0]                               # SMEM scalars
    shift = ss_ref[1]
    zbn = z_ref[...] * scale + shift                # (TB, 1) f32
    out_ref[...] = (zbn * w2_ref[...] + b2_ref[...]).astype(out_ref.dtype)


def ph_block(x, w1, gamma, beta, w2, b2, *, batch_norm=True, eps=BN_EPS):
    """x: (B, Din); w1: (1, Din); w2: (Dout, 1); b2: (Dout,); gamma/beta scalars."""
    B, Din = x.shape
    Dout = w2.shape[0]
    out_dtype = x.dtype
    x_bytes = jnp.dtype(x.dtype).itemsize
    out_bytes = jnp.dtype(out_dtype).itemsize

    budget = _vmem_budget_bytes()

    # ---- pass 1: stream (TB1, Din) x tiles, emit z = x @ w1 -----------------
    # Double-buffered footprint ~ 2*TB1*(Din*x_bytes + 4).  For very large Din,
    # a K grid axis over Din (accumulating z in VMEM scratch) would be better
    # than shrinking TB1 below ~256; not needed at these sizes.
    TB1 = _pick_tile_b(2 * (Din * x_bytes + 4), budget, B)
    nT1 = pl.cdiv(B, TB1)

    w1_col = w1.reshape(1, Din).T.astype(x.dtype)            # (Din, 1) for MXU

    z = pl.pallas_call(
        _linear1_kernel,
        out_shape=jax.ShapeDtypeStruct((B, 1), jnp.float32),
        grid=(nT1,),
        in_specs=[
            pl.BlockSpec((TB1, Din), lambda i: (i, 0)),      # streamed x tiles
            pl.BlockSpec((Din, 1), lambda i: (0, 0)),        # w1 resident
        ],
        out_specs=pl.BlockSpec((TB1, 1), lambda i: (i, 0)),
        compiler_params=pltpu.CompilerParams(
            dimension_semantics=("parallel",),               # both TCs on v7x
            vmem_limit_bytes=budget,
        ),
    )(x, w1_col)

    # ---- BatchNorm (train-mode batch stats) folded into one scale/shift -----
    # z is tiny (B*4 bytes) next to the x read, so the stats cost ~nothing here
    # and use the numerically stable centered variance formula.
    # TODO(synk): BatchNorm1d running_mean/running_var buffer updates are not
    # modeled; the forward output (train mode, batch statistics) is matched.
    if batch_norm:
        zf = z.astype(jnp.float32)
        mean = jnp.mean(zf)
        var = jnp.mean(jnp.square(zf - mean))                # biased, BN train
        g = jnp.asarray(gamma, jnp.float32).reshape(())
        bt = jnp.asarray(beta, jnp.float32).reshape(())
        scale = g * jax.lax.rsqrt(var + jnp.float32(eps))
        shift = bt - mean * scale
    else:
        scale = jnp.float32(1.0)
        shift = jnp.float32(0.0)
    ssvec = jnp.stack([scale, shift]).astype(jnp.float32)    # (2,) -> SMEM

    # ---- pass 2: (TB2, TD) output tiles, no pad / no post-slice -------------
    # Dout multiple of 128 -> lane-dense column tiles (unmasked vst);
    # otherwise a single full-width column block (block dim == full array dim),
    # avoiding the pad + slice-copy round trip through HBM.
    if Dout % 128 == 0:
        TD = min(Dout, 512)
    else:
        TD = Dout
    nD = pl.cdiv(Dout, TD)

    TB2 = _pick_tile_b(2 * (TD * out_bytes + 4), budget, B)
    nT2 = pl.cdiv(B, TB2)

    w2_row = w2.reshape(1, Dout).astype(jnp.float32)
    b2_row = b2.reshape(1, Dout).astype(jnp.float32)

    out = pl.pallas_call(
        _bn_linear2_kernel,
        out_shape=jax.ShapeDtypeStruct((B, Dout), out_dtype),
        grid=(nT2, nD),
        in_specs=[
            pl.BlockSpec(memory_space=pltpu.MemorySpace.SMEM),   # [scale, shift]
            pl.BlockSpec((TB2, 1), lambda i, j: (i, 0)),         # z tiles
            pl.BlockSpec((1, TD), lambda i, j: (0, j)),          # w2 resident
            pl.BlockSpec((1, TD), lambda i, j: (0, j)),          # b2 resident
        ],
        out_specs=pl.BlockSpec((TB2, TD), lambda i, j: (i, j)),
        compiler_params=pltpu.CompilerParams(
            dimension_semantics=("parallel", "parallel"),        # 2 TCs on v7x
            vmem_limit_bytes=budget,
        ),
    )(ssvec, z, w2_row, b2_row)

    return out


def reference(x, w1, gamma, beta, w2, b2, eps=BN_EPS):
    z = x @ w1.T                                            # (B, 1)
    mean = jnp.mean(z, axis=0, keepdims=True)
    var = jnp.mean((z - mean) ** 2, axis=0, keepdims=True)  # biased (train mode)
    zbn = (z - mean) / jnp.sqrt(var + eps) * gamma + beta
    return zbn @ w2.T + b2                                  # (B, Dout)


if __name__ == "__main__":
    B, dim_in, dim_out = 8, 32, 32

    key = jax.random.PRNGKey(0)
    kx, kw1, kb2 = jax.random.split(key, 3)

    x = jax.random.normal(kx, (B, dim_in), dtype=jnp.float32)
    # linear1: nn.Linear(dim_in, 1, bias=False) -> weight (1, dim_in)
    bound = 1.0 / jnp.sqrt(jnp.float32(dim_in))
    w1 = jax.random.uniform(kw1, (1, dim_in), jnp.float32, -bound, bound)
    # BatchNorm1d(1): gamma=1, beta=0
    gamma = jnp.ones((), jnp.float32)
    beta = jnp.zeros((), jnp.float32)
    # linear2: nn.Linear(1, dim_out): weight (dim_out, 1) forced to ones, bias ~ N(0, 0.5)
    w2 = jnp.ones((dim_out, 1), jnp.float32)
    b2 = 0.5 * jax.random.normal(kb2, (dim_out,), jnp.float32)

    out = ph_block(x, w1, gamma, beta, w2, b2)
    jax.block_until_ready(out)

    ref = reference(x, w1, gamma, beta, w2, b2)
    assert out.shape == (B, dim_out)
    assert jnp.allclose(out, ref, atol=1e-5, rtol=1e-5), float(
        jnp.max(jnp.abs(out - ref)))

    print("KERNEL_OK")
</pallas_src>

<mosaic_0001>
module attributes {stable_mosaic.version = 11 : i64} {
  func.func @_linear1_kernel(%arg0: i32, %arg1: memref<8x32xf32, #tpu.memory_space<vmem>>, %arg2: memref<32x1xf32, #tpu.memory_space<vmem>>, %arg3: memref<8x1xf32, #tpu.memory_space<vmem>>) attributes {dimension_semantics = [#tpu.dimension_semantics<parallel>], iteration_bounds = array<i64: 1>, scalar_prefetch = 0 : i64, scratch_operands = 0 : i64, tpu.core_type = #tpu.core_type<tc>, window_params = [{transform_indices = @transform_0, window_bounds = array<i64: 8, 32>}, {pipeline_mode = #tpu.pipeline_mode<synchronous>, transform_indices = @transform_1, window_bounds = array<i64: 32, 1>}, {transform_indices = @transform_2, window_bounds = array<i64: 8, 1>}]} {
    %c0 = arith.constant 0 : index
    %c0_0 = arith.constant 0 : index
    %0 = vector.load %arg1[%c0, %c0_0] : memref<8x32xf32, #tpu.memory_space<vmem>>, vector<8x32xf32>
    %c0_1 = arith.constant 0 : index
    %c0_2 = arith.constant 0 : index
    %1 = vector.load %arg2[%c0_1, %c0_2] : memref<32x1xf32, #tpu.memory_space<vmem>>, vector<32x1xf32>
    %cst = arith.constant dense<0.000000e+00> : vector<8x1xf32>
    %2 = tpu.matmul %0, %1, %cst {dimension_numbers = #tpu.dot_dimension_numbers<[1], [0], [0], [1], [0, 0, 1, 1], [], []>} : vector<8x32xf32>, vector<32x1xf32>, vector<8x1xf32> -> vector<8x1xf32>
    %c0_3 = arith.constant 0 : index
    %c0_4 = arith.constant 0 : index
    %3 = vector.load %arg3[%c0_3, %c0_4] : memref<8x1xf32, #tpu.memory_space<vmem>>, vector<8x1xf32>
    tpu.vector_store %arg3[%c0_3, %c0_4], %2 {strides = array<i32>} : memref<8x1xf32, #tpu.memory_space<vmem>>, vector<8x1xf32>,
    return
  }
  func.func @transform_0(%arg0: i32) -> (i32, i32) {
    %c0_i32 = arith.constant 0 : i32
    %c0_i32_0 = arith.constant 0 : i32
    return %arg0, %c0_i32 : i32, i32
  }
  func.func @transform_1(%arg0: i32) -> (i32, i32) {
    %c0_i32 = arith.constant 0 : i32
    %c0_i32_0 = arith.constant 0 : i32
    %c0_i32_1 = arith.constant 0 : i32
    return %c0_i32, %c0_i32_0 : i32, i32
  }
  func.func @transform_2(%arg0: i32) -> (i32, i32) {
    %c0_i32 = arith.constant 0 : i32
    %c0_i32_0 = arith.constant 0 : i32
    return %arg0, %c0_i32 : i32, i32
  }
}

</mosaic_0001>

<llo_original>
// kernel: tpu_custom_call.1
$region0: #{tpu_custom_call.1}
  #allocation0 [shape = 'u32[]', space=smem, size = 0x4, offset = 0x4, fixed_abs, tag = 'smem constant byte address 0x4 - core index']
  #allocation1 [shape = 'u32[144,128]{1,0:T(1,128)}', space=vmem, size = 0x12000, scoped, tag = 'internal scratch']
  %s0 = inlined_call_operand.vmem [shape: f32[8,32], index: 0, kind: input, shape index: {}]
  %s1 = inlined_call_operand.vmem [shape: f32[32,1], index: 1, kind: input, shape index: {}]
  %s2 = inlined_call_operand.vmem [shape: f32[8,1], index: 2, kind: output, shape index: {}]
  %s3 = sld [smem:[#allocation0]]
  $region18: #{tpu_custom_call.1} parent=0
    _
  %s5 = ssub.s32 1, %s3
  %s6 = scalar_select 0, %s5, %s3
  // Predicated region
  $region2: #{tpu_custom_call.1} parent=0 // pred_check
    _
  $region3: #{tpu_custom_call.1} parent=0 // pred_check_branch
    %8 = sbr.rel (0) target = $region5
  $region4: #{tpu_custom_call.1} parent=0 // pred_region
    _
  $region5: #{tpu_custom_call.1} parent=0 // pred_fallthru
    _
  // Predicated region
  $region6: #{tpu_custom_call.1} parent=0 // pred_check
    _
  $region7: #{tpu_custom_call.1} parent=0 // pred_check_branch
    %10 = sbr.rel (0) target = $region9
  $region8: #{tpu_custom_call.1} parent=0 // pred_region
    _
  $region9: #{tpu_custom_call.1} parent=0 // pred_fallthru
    _
  %v11 = vld [vmem:[%s0] sm:$0xff]
  %v12 = vld [vmem:[%s1] sm:$0xff]
  %v13 = vld [vmem:[%s1 + $0x8] sm:$0xff]
  %v14 = vld [vmem:[%s1 + $0x10] sm:$0xff]
  %v15 = vld [vmem:[%s1 + $0x18] sm:$0xff]
  %vm16 = vcmask 261120
  %v18 = vsel %vm16, %v11, 0
  %20 = vmatprep.subr.mxu0 0.0
  %21 = vmatpush1.msra.mxu0 0.0
  %22 = vmatprep.subr.mxu0 0.0
  %23 = vmatpush1.msra.mxu0 0.0
  %24 = vmatprep.subr.mxu0 0.0
  %25 = vmatpush1.msra.mxu0 0.0
  %26 = vmatprep.subr.mxu0 0.0
  %27 = vmatpush1.msra.mxu0 0.0
  %28 = vmatprep.subr.mxu0 0.0
  %29 = vmatpush1.msra.mxu0 0.0
  %30 = vmatprep.subr.mxu0 0.0
  %31 = vmatpush1.msra.mxu0 0.0
  %32 = vmatprep.subr.mxu0 0.0
  %33 = vmatpush1.msra.mxu0 0.0
  %34 = vmatprep.subr.mxu0 0.0
  %35 = vmatpush1.msra.mxu0 0.0
  %36 = vmatprep.subr.mxu0 0.0
  %37 = vmatpush1.msra.mxu0 0.0
  %38 = vmatprep.subr.mxu0 0.0
  %39 = vmatpush1.msra.mxu0 0.0
  %40 = vmatprep.subr.mxu0 0.0
  %41 = vmatpush1.msra.mxu0 0.0
  %42 = vmatprep.subr.mxu0 0.0
  %43 = vmatpush1.msra.mxu0 0.0
  %44 = vmatprep.subr.mxu0 0.0
  %45 = vmatpush1.msra.mxu0 %v15
  %46 = vmatprep.subr.mxu0 0.0
  %47 = vmatpush1.msra.mxu0 %v14
  %48 = vmatprep.subr.mxu0 0.0
  %49 = vmatpush1.msra.mxu0 %v13
  %50 = vmatprep.subr.mxu0 0.0
  %51 = vmatpush1.msra.mxu0 %v12
  %52 = vmatprep.subr.mxu0 0.0
  %53 = vmatpush2.msra.mxu0 0.0
  %54 = vmatprep.subr.mxu0 0.0
  %55 = vmatpush2.msra.mxu0 0.0
  %56 = vmatprep.subr.mxu0 0.0
  %57 = vmatpush2.msra.mxu0 0.0
  %58 = vmatprep.subr.mxu0 0.0
  %59 = vmatpush2.msra.mxu0 0.0
  %60 = vmatprep.subr.mxu0 0.0
  %61 = vmatpush2.msra.mxu0 0.0
  %62 = vmatprep.subr.mxu0 0.0
  %63 = vmatpush2.msra.mxu0 0.0
  %64 = vmatprep.subr.mxu0 0.0
  %65 = vmatpush2.msra.mxu0 0.0
  %66 = vmatprep.subr.mxu0 0.0
  %67 = vmatpush2.msra.mxu0 0.0
  %68 = vmatprep.subr.mxu0 0.0
  %69 = vmatpush2.msra.mxu0 0.0
  %70 = vmatprep.subr.mxu0 0.0
  %71 = vmatpush2.msra.mxu0 0.0
  %72 = vmatprep.subr.mxu0 0.0
  %73 = vmatpush2.msra.mxu0 0.0
  %74 = vmatprep.subr.mxu0 0.0
  %75 = vmatpush2.msra.mxu0 0.0
  %76 = vmatprep.subr.mxu0 0.0
  %77 = vmatpush2.msra.mxu0 0.0
  %78 = vmatprep.subr.mxu0 0.0
  %79 = vmatpush2.msra.mxu0 0.0
  %80 = vmatprep.subr.mxu0 0.0
  %81 = vmatpush2.msra.mxu0 0.0
  %82 = vmatprep.subr.mxu0 0.0
  %83 = vmatpush2.msra.mxu0 0.0
  %84 = vmatprep.mubr.f32.mxu0 0.0
  %85 = vmatmul.mubr.f32.gmra.mxu0 %v18
  %v86 = vpop.f32.mrf.mxu0
  %v87 = vadd.f32 0.0, %v86
  %v88 = vpop.f32.mrf.mxu0
  %89 = vdwg.mxu0
  %vm90 = vcmask 7168
  %91 = vst.msk [vmem:[%s2] sm:$0xff] %vm90, %v87
  // Predicated region
  $region10: #{tpu_custom_call.1} parent=0 // pred_check
    _
  $region11: #{tpu_custom_call.1} parent=0 // pred_check_branch
    %93 = sbr.rel (0) target = $region13
  $region12: #{tpu_custom_call.1} parent=0 // pred_region
    _
  $region13: #{tpu_custom_call.1} parent=0 // pred_fallthru
    _
  // Predicated region
  $region14: #{tpu_custom_call.1} parent=0 // pred_check
    _
  $region15: #{tpu_custom_call.1} parent=0 // pred_check_branch
    %95 = sbr.rel (0) target = $region17
  $region16: #{tpu_custom_call.1} parent=0 // pred_region
    _
  $region17: #{tpu_custom_call.1} parent=0 // pred_fallthru
    _

</llo_original>
